<compile_context>
chip_gen: v6e
topology: v6e:2x2x1
jax: 0.10.0
libtpu: 0.0.40
codegen_flags: <defaults>
</compile_context>

<pallas_src>
import functools

import jax
import jax.numpy as jnp
from jax.experimental import pallas as pl
from jax.experimental.pallas import tpu as pltpu


# ---------------------------------------------------------------------------
# Kernels
# ---------------------------------------------------------------------------

def _concat_linear_kernel(x_ref, w_ref, b_ref, o_ref, *, hidden):
    """Resident-weight path (1-D grid over row tiles).

    x_ref : (TM, H)   input row tile
    w_ref : (H, H)    bf16 weight, pre-transposed to (in, out)
    b_ref : (1, H)    f32 bias
    o_ref : (TM, 2H)  fused output tile = [x | x @ W^T + b]
    """
    x = x_ref[...]
    o_ref[:, :hidden] = x.astype(o_ref.dtype)                 # pass-through half
    y = jnp.dot(x.astype(w_ref.dtype), w_ref[...],
                preferred_element_type=jnp.float32)           # MXU, f32 accum
    o_ref[:, hidden:] = (y + b_ref[...]).astype(o_ref.dtype)  # Linear half


def _concat_linear_ntiled_kernel(x_full_ref, x_col_ref, w_ref, b_ref, o_ref, *,
                                 nb):
    """N-tiled path (grid = (row tiles, 2*nb column blocks of width tile_n)).

    j <  nb : write pass-through column block j  (copy of x's column block)
    j >= nb : write linear column block j - nb   (x @ W_t[:, block] + b[block])

    x_full_ref : (TM, H)       full-width x row tile (for the matmul)
    x_col_ref  : (TM, TN)      column block of x (for the pass-through half)
    w_ref      : (H, TN)       bf16 weight column block, (in, out) layout
    b_ref      : (1, TN)       f32 bias block
    o_ref      : (TM, TN)      one lane-dense output column block
    """
    j = pl.program_id(1)

    @pl.when(j < nb)
    def _():
        o_ref[...] = x_col_ref[...].astype(o_ref.dtype)

    @pl.when(j >= nb)
    def _():
        y = jnp.dot(x_full_ref[...].astype(w_ref.dtype), w_ref[...],
                    preferred_element_type=jnp.float32)
        o_ref[...] = (y + b_ref[...]).astype(o_ref.dtype)


# ---------------------------------------------------------------------------
# Tile / VMEM planning
# ---------------------------------------------------------------------------

def _round_up(x, m):
    return ((x + m - 1) // m) * m


def _vmem_capacity_bytes():
    try:
        return int(pltpu.get_tpu_info().vmem_capacity_bytes)
    except Exception:
        return 64 * 1024 * 1024  # conservative fallback (v7x per-TC VMEM)


def _plan(M, H, out_itemsize, tile_m, tile_n, force_n_tiling):
    vmem_cap = _vmem_capacity_bytes()
    vmem_limit = (vmem_cap // 8) * 7          # ~87.5%: ~56 MiB v7x, ~112 MiB v5e/v6e
    budget = vmem_limit - (2 << 20)           # headroom for compiler scratch
    two_tc = vmem_cap <= 64 * 1024 * 1024     # v7x-class: small per-TC VMEM, 2 TCs

    # Resident-weight path cost: double-buffered x tile, double-buffered
    # (tile_m, 2H) output tile, plus live temporaries (bf16 x copy, f32 y).
    res_row = 2 * H * 4 + 2 * (2 * H) * out_itemsize + 2 * H + 4 * H
    res_fixed = 2 * (H * H * 2) + 2 * H * 4   # dbuf bf16 weight + f32 bias

    use_n = bool(force_n_tiling)
    if not use_n:
        # Stream the weight only when keeping it resident would squeeze row
        # tiles below ~128 rows (tiny lane-sparse DMAs + per-step overhead).
        use_n = (budget - res_fixed) < 128 * res_row

    if use_n:
        if tile_n is None:
            for cand in (1024, 512, 256, 128):
                if cand <= H and H % cand == 0:
                    tile_n = cand
                    break
        if not (tile_n and tile_n <= H and H % tile_n == 0 and tile_n % 128 == 0):
            # TODO(synk): N-tiling requires H % 128 == 0; for other H keep the
            # resident-weight path (tile_m may shrink for very large odd H).
            use_n, tile_n = False, None

    if use_n:
        n_row = (2 * H * 4 + 2 * tile_n * 4 + 2 * tile_n * out_itemsize
                 + 2 * H + 4 * tile_n)
        n_fixed = 2 * (H * tile_n * 2) + 2 * tile_n * 4
        cap_rows = max((budget - n_fixed) // n_row, 8)
    else:
        tile_n = None
        cap_rows = max((budget - res_fixed) // res_row, 8)

    if tile_m is None:
        tile_m = min(1024, int(cap_rows))
        if two_tc and M >= 256:
            # v7x megacore: aim for >=4 grid steps per TensorCore (>=8 total),
            # but never drop row tiles below 128.  1-TC chips keep big tiles.
            tile_m = min(tile_m, max(128, _round_up(pl.cdiv(M, 8), 8)))
        tile_m = min(tile_m, _round_up(M, 8))   # don't over-tile tiny M
    tile_m = max(8, (int(tile_m) // 8) * 8)

    return tile_m, tile_n, use_n, int(vmem_limit)


# ---------------------------------------------------------------------------
# Wrapper
# ---------------------------------------------------------------------------

@functools.partial(
    jax.jit, static_argnames=("out_dtype", "tile_m", "tile_n", "force_n_tiling"))
def concater_linear(x, weight, bias, *, out_dtype=None, tile_m=None, tile_n=None,
                    force_n_tiling=False):
    """Concater(nn.Linear(H, H), dim=-1): concat((x, x @ W^T + b), -1).

    x      : (B, S, H)
    weight : (H, H)  PyTorch Linear layout (out_features, in_features)
    bias   : (H,)
    returns: (B, S, 2H) in `out_dtype` (default x.dtype -> pass-through half is
             bit-exact; pass jnp.bfloat16 to halve the dominant output write).
    """
    B, S, H = x.shape
    M = B * S
    out_dtype = x.dtype if out_dtype is None else jnp.dtype(out_dtype)
    out_itemsize = jnp.dtype(out_dtype).itemsize

    tile_m, tile_n, use_n, vmem_limit = _plan(
        M, H, out_itemsize, tile_m, tile_n, force_n_tiling)

    x2d = x.reshape(M, H)
    # One-time wrapper-side prep (fused by XLA under jit): bf16 halves the
    # weight's DMA/VMEM footprint; (in, out) layout avoids any per-grid-step
    # transpose of the weight inside the kernel.
    w_t = weight.T.astype(jnp.bfloat16)
    b2d = bias.reshape(1, H).astype(jnp.float32)

    grid_m = pl.cdiv(M, tile_m)   # ragged last block: reads padded, writes clipped

    x_bytes = M * H * x.dtype.itemsize
    w_bytes = H * H * 2
    out_bytes = M * 2 * H * out_itemsize
    cost = pl.CostEstimate(
        flops=2 * M * H * H,
        transcendentals=0,
        bytes_accessed=((2 * x_bytes + grid_m * w_bytes) if use_n
                        else (x_bytes + w_bytes)) + out_bytes + H * 4)

    if use_n:
        nb = H // tile_n
        kernel = functools.partial(_concat_linear_ntiled_kernel, nb=nb)
        out2d = pl.pallas_call(
            kernel,
            out_shape=jax.ShapeDtypeStruct((M, 2 * H), out_dtype),
            grid=(grid_m, 2 * nb),
            in_specs=[
                # full-width x row tile (constant across j -> fetched once per i)
                pl.BlockSpec((tile_m, H), lambda i, j: (i, 0)),
                # x column blocks for the pass-through half; frozen once j >= nb
                pl.BlockSpec((tile_m, tile_n),
                             lambda i, j: (i, jnp.minimum(j, nb - 1))),
                # weight / bias column blocks; held at block 0 while j < nb
                pl.BlockSpec((H, tile_n),
                             lambda i, j: (0, jnp.maximum(j - nb, 0))),
                pl.BlockSpec((1, tile_n),
                             lambda i, j: (0, jnp.maximum(j - nb, 0))),
            ],
            out_specs=pl.BlockSpec((tile_m, tile_n), lambda i, j: (i, j)),
            compiler_params=pltpu.CompilerParams(
                dimension_semantics=("parallel", "arbitrary"),
                vmem_limit_bytes=vmem_limit),
            cost_estimate=cost,
        )(x2d, x2d, w_t, b2d)
    else:
        kernel = functools.partial(_concat_linear_kernel, hidden=H)
        out2d = pl.pallas_call(
            kernel,
            out_shape=jax.ShapeDtypeStruct((M, 2 * H), out_dtype),
            grid=(grid_m,),
            in_specs=[
                pl.BlockSpec((tile_m, H), lambda i: (i, 0)),
                pl.BlockSpec((H, H), lambda i: (0, 0)),     # resident weight
                pl.BlockSpec((1, H), lambda i: (0, 0)),
            ],
            out_specs=pl.BlockSpec((tile_m, 2 * H), lambda i: (i, 0)),
            compiler_params=pltpu.CompilerParams(
                dimension_semantics=("parallel",),
                vmem_limit_bytes=vmem_limit),
            cost_estimate=cost,
        )(x2d, w_t, b2d)

    return out2d.reshape(B, S, 2 * H)


# ---------------------------------------------------------------------------
# Self-test
# ---------------------------------------------------------------------------

if __name__ == "__main__":
    root = jax.random.PRNGKey(0)

    def reference(x, w, b):
        lin = jnp.einsum("bsh,oh->bso", x, w) + b
        return jnp.concatenate([x, lin], axis=-1)

    def check(B, S, H, **kwargs):
        kx, kw, kb = jax.random.split(
            jax.random.fold_in(root, B * 131 + S * 17 + H), 3)
        x = jax.random.normal(kx, (B, S, H), dtype=jnp.float32)
        w = jax.random.normal(kw, (H, H), dtype=jnp.float32) * 0.1
        b = jax.random.normal(kb, (H,), dtype=jnp.float32) * 0.1
        out = jax.block_until_ready(concater_linear(x, w, b, **kwargs))
        ref = reference(x, w, b)
        assert out.shape == (B, S, 2 * H), out.shape
        # Pass-through half of the concat must be bit-exact.
        assert jnp.array_equal(out[..., :H], x)
        # Linear half: bf16 operands on the MXU with f32 accumulation.
        err = float(jnp.max(jnp.abs(out[..., H:] - ref[..., H:])))
        assert jnp.allclose(out[..., H:], ref[..., H:], atol=5e-2, rtol=5e-2), err

    # Small shape implied by the module (B=2, S=8, H=32): resident-weight path.
    check(2, 8, 32)
    # Ragged M (M % tile_m != 0): exercises the pad-free edge-block handling.
    check(2, 13, 32, tile_m=8)
    # Output-feature (N) tiled path (chosen automatically for large H / small
    # VMEM); forced here at a small, 128-aligned H so the self-test covers it.
    check(2, 64, 256, tile_n=128, force_n_tiling=True)

    print("KERNEL_OK")
</pallas_src>

<mosaic_0001>
module attributes {stable_mosaic.version = 11 : i64} {
  func.func @_concat_linear_kernel(%arg0: i32, %arg1: memref<16x32xf32, #tpu.memory_space<vmem>>, %arg2: memref<32x32xbf16, #tpu.memory_space<vmem>>, %arg3: memref<1x32xf32, #tpu.memory_space<vmem>>, %arg4: memref<16x64xf32, #tpu.memory_space<vmem>>) attributes {dimension_semantics = [#tpu.dimension_semantics<parallel>], iteration_bounds = array<i64: 1>, scalar_prefetch = 0 : i64, scratch_operands = 0 : i64, tpu.core_type = #tpu.core_type<tc>, window_params = [{transform_indices = @transform_0, window_bounds = array<i64: 16, 32>}, {pipeline_mode = #tpu.pipeline_mode<synchronous>, transform_indices = @transform_1, window_bounds = array<i64: 32, 32>}, {pipeline_mode = #tpu.pipeline_mode<synchronous>, transform_indices = @transform_2, window_bounds = array<i64: 1, 32>}, {transform_indices = @transform_3, window_bounds = array<i64: 16, 64>}]} {
    %c0 = arith.constant 0 : index
    %c0_0 = arith.constant 0 : index
    %0 = vector.load %arg1[%c0, %c0_0] : memref<16x32xf32, #tpu.memory_space<vmem>>, vector<16x32xf32>
    %c0_1 = arith.constant 0 : index
    %c0_2 = arith.constant 0 : index
    %1 = vector.load %arg4[%c0_1, %c0_2] : memref<16x64xf32, #tpu.memory_space<vmem>>, vector<16x32xf32>
    tpu.vector_store %arg4[%c0_1, %c0_2], %0 {strides = array<i32>} : memref<16x64xf32, #tpu.memory_space<vmem>>, vector<16x32xf32>,
    %2 = arith.truncf %0 : vector<16x32xf32> to vector<16x32xbf16>
    %c0_3 = arith.constant 0 : index
    %c0_4 = arith.constant 0 : index
    %3 = vector.load %arg2[%c0_3, %c0_4] : memref<32x32xbf16, #tpu.memory_space<vmem>>, vector<32x32xbf16>
    %cst = arith.constant dense<0.000000e+00> : vector<16x32xf32>
    %4 = tpu.matmul %2, %3, %cst {dimension_numbers = #tpu.dot_dimension_numbers<[1], [0], [0], [1], [0, 0, 1, 1], [], []>} : vector<16x32xbf16>, vector<32x32xbf16>, vector<16x32xf32> -> vector<16x32xf32>
    %c0_5 = arith.constant 0 : index
    %c0_6 = arith.constant 0 : index
    %5 = vector.load %arg3[%c0_5, %c0_6] : memref<1x32xf32, #tpu.memory_space<vmem>>, vector<1x32xf32>
    %6 = vector.broadcast %5 : vector<1x32xf32> to vector<16x32xf32>
    %7 = arith.addf %4, %6 : vector<16x32xf32>
    %c0_7 = arith.constant 0 : index
    %c32 = arith.constant 32 : index
    %8 = vector.load %arg4[%c0_7, %c32] : memref<16x64xf32, #tpu.memory_space<vmem>>, vector<16x32xf32>
    tpu.vector_store %arg4[%c0_7, %c32], %7 {strides = array<i32>} : memref<16x64xf32, #tpu.memory_space<vmem>>, vector<16x32xf32>,
    return
  }
  func.func @transform_0(%arg0: i32) -> (i32, i32) {
    %c0_i32 = arith.constant 0 : i32
    %c0_i32_0 = arith.constant 0 : i32
    return %arg0, %c0_i32 : i32, i32
  }
  func.func @transform_1(%arg0: i32) -> (i32, i32) {
    %c0_i32 = arith.constant 0 : i32
    %c0_i32_0 = arith.constant 0 : i32
    %c0_i32_1 = arith.constant 0 : i32
    return %c0_i32, %c0_i32_0 : i32, i32
  }
  func.func @transform_2(%arg0: i32) -> (i32, i32) {
    %c0_i32 = arith.constant 0 : i32
    %c0_i32_0 = arith.constant 0 : i32
    %c0_i32_1 = arith.constant 0 : i32
    return %c0_i32, %c0_i32_0 : i32, i32
  }
  func.func @transform_3(%arg0: i32) -> (i32, i32) {
    %c0_i32 = arith.constant 0 : i32
    %c0_i32_0 = arith.constant 0 : i32
    return %arg0, %c0_i32 : i32, i32
  }
}

</mosaic_0001>

<llo_original>
// kernel: concater_linear.1
$region0: #{concater_linear.1}
  #allocation0 [shape = 'u32[]', space=smem, size = 0x4, offset = 0x4, fixed_abs, tag = 'smem constant byte address 0x4 - core index']
  #allocation1 [shape = 'u32[144,128]{1,0:T(1,128)}', space=vmem, size = 0x12000, scoped, tag = 'internal scratch']
  %s0 = inlined_call_operand.vmem [shape: f32[16,32], index: 0, kind: input, shape index: {}]
  %s1 = inlined_call_operand.vmem [shape: bf16[32,32], index: 1, kind: input, shape index: {}]
  %s2 = inlined_call_operand.vmem [shape: f32[1,32], index: 2, kind: input, shape index: {}]
  %s3 = inlined_call_operand.hbm [shape: f32[16,64], index: 3, kind: output, shape index: {}]
  %s4 = sld [smem:[#allocation0]]
  $region22: #{concater_linear.1} parent=0
    _
  %s6 = ssub.s32 1, %s4
  %s7 = scalar_select 0, %s6, %s4
  $region1: #{concater_linear.1} parent=0
    #allocation2 [shape = 'u8[8192]{0}', space=vmem, size = 0x2000, scoped, tag = 'output window, operand 0, single buffered']
    #allocation3 [shape = 's32[1]{0}', space=sflag, size = 0x4, scoped, tag = 'scoped memory for concater_linear.1']
    %8 = vsyncpa [#allocation3], 0
    // Predicated region
    $region2: #{concater_linear.1} parent=1 // pred_check
      _
    $region3: #{concater_linear.1} parent=1 // pred_check_branch
      %10 = sbr.rel (0) target = $region5
    $region4: #{concater_linear.1} parent=1 // pred_region
      _
    $region5: #{concater_linear.1} parent=1 // pred_fallthru
      _
    // Predicated region
    $region6: #{concater_linear.1} parent=1 // pred_check
      _
    $region7: #{concater_linear.1} parent=1 // pred_check_branch
      %12 = sbr.rel (0) target = $region9
    $region8: #{concater_linear.1} parent=1 // pred_region
      _
    $region9: #{concater_linear.1} parent=1 // pred_fallthru
      _
    // Predicated region
    $region10: #{concater_linear.1} parent=1 // pred_check
      _
    $region11: #{concater_linear.1} parent=1 // pred_check_branch
      %14 = sbr.rel (0) target = $region13
    $region12: #{concater_linear.1} parent=1 // pred_region
      _
    $region13: #{concater_linear.1} parent=1 // pred_fallthru
      _
    %v16 = vld [vmem:[%s0] sm:$0xff]
    %v17 = vld [vmem:[%s0 + $0x8] sm:$0xff]
    %vm18 = vcmask 261120
    %19 = vst.msk [vmem:[#allocation2] sm:$0xff] %vm18, %v16
    %20 = vst.msk [vmem:[#allocation2 + $0x8] sm:$0xff] %vm18, %v17
    %v21 = vpack.c.bf16 %v17, %v16
    %v22 = vld [vmem:[%s1] sm:$0xf]
    %v23 = vld [vmem:[%s1 + $0x4] sm:$0xf]
    %v24 = vld [vmem:[%s1 + $0x8] sm:$0xf]
    %v25 = vld [vmem:[%s1 + $0xc] sm:$0xf]
    %v26 = vld [vmem:[%s2] sm:$0x1]
    %v28 = vlaneseq
    %v29 = vshrl.u32 %v28, 7
    %v30 = vsub.s32 0, %v29
    %v31 = vrot.slane %v26, %v30
    %v37 = vunpack.c.l.b16 %v22
    %v38 = vunpack.c.l.b16 %v23
    %v39 = vunpack.c.l.b16 %v24
    %v40 = vunpack.c.l.b16 %v25
    %v41 = vpack.c.b16 %v38, %v37
    %v42 = vpack.c.b16 %v40, %v39
    %v46 = vsel %vm18, %v21, 0
    %48 = vmatprep.subr.bf16.mxu0 0
    %49 = vmatpush1.bf16.msra.mxu0 0
    %50 = vmatprep.subr.bf16.mxu0 0
    %51 = vmatpush1.bf16.msra.mxu0 0
    %52 = vmatprep.subr.bf16.mxu0 0
    %53 = vmatpush1.bf16.msra.mxu0 0
    %54 = vmatprep.subr.bf16.mxu0 0
    %55 = vmatpush1.bf16.msra.mxu0 0
    %56 = vmatprep.subr.bf16.mxu0 0
    %57 = vmatpush1.bf16.msra.mxu0 0
    %58 = vmatprep.subr.bf16.mxu0 0
    %59 = vmatpush1.bf16.msra.mxu0 0
    %60 = vmatprep.subr.bf16.mxu0 0
    %61 = vmatpush1.bf16.msra.mxu0 %v42
    %62 = vmatprep.subr.bf16.mxu0 0
    %63 = vmatpush1.bf16.msra.mxu0 %v41
    %64 = vmatprep.subr.bf16.mxu0 0
    %65 = vmatpush2.bf16.msra.mxu0 0
    %66 = vmatprep.subr.bf16.mxu0 0
    %67 = vmatpush2.bf16.msra.mxu0 0
    %68 = vmatprep.subr.bf16.mxu0 0
    %69 = vmatpush2.bf16.msra.mxu0 0
    %70 = vmatprep.subr.bf16.mxu0 0
    %71 = vmatpush2.bf16.msra.mxu0 0
    %72 = vmatprep.subr.bf16.mxu0 0
    %73 = vmatpush2.bf16.msra.mxu0 0
    %74 = vmatprep.subr.bf16.mxu0 0
    %75 = vmatpush2.bf16.msra.mxu0 0
    %76 = vmatprep.subr.bf16.mxu0 0
    %77 = vmatpush2.bf16.msra.mxu0 0
    %78 = vmatprep.subr.bf16.mxu0 0
    %79 = vmatpush2.bf16.msra.mxu0 0
    %80 = vmatprep.mubr.bf16.mxu0 0
    %81 = vmatmul.mubr.bf16.gmra.mxu0 %v46
    %v82 = vpop.f32.mrf.mxu0
    %v83 = vadd.f32 %v31, %v82
    %v84 = vpop.f32.mrf.mxu0
    %v85 = vpop.f32.mrf.mxu0
    %v86 = vadd.f32 %v31, %v85
    %v87 = vpop.f32.mrf.mxu0
    %88 = vdwg.mxu0
    %91 = vrot.lane.b32.xlu0 %v83, 32
    %v92 = vpop.permute.xlu0 %91
    %93 = vrot.lane.b32.xlu0 %v86, 32
    %v94 = vpop.permute.xlu0 %93
    %vm97 = vcmask 523520
    %98 = vst.msk [vmem:[#allocation2] sm:$0xff] %vm97, %v92
    %99 = vst.msk [vmem:[#allocation2 + $0x8] sm:$0xff] %vm97, %v94
    // Predicated region
    $region14: #{concater_linear.1} parent=1 // pred_check
      _
    $region15: #{concater_linear.1} parent=1 // pred_check_branch
      %101 = sbr.rel (0) target = $region17
    $region16: #{concater_linear.1} parent=1 // pred_region
      %s103 = ssub.s32 256, 256
      %104 = vsyncadd [#allocation3], %s103
      %s105 = sshll.u32 [#allocation2], 4
      %s106 = int_to_ptr.vmem [resolvable:$true] %s105
      %111 = dma.vmem_to_hbm [thread:$0]  %s106, 256, %s3, [#allocation3], 128, 128, 8
    $region17: #{concater_linear.1} parent=1 // pred_fallthru
      _
    // Predicated region
    $region18: #{concater_linear.1} parent=1 // pred_check
      _
    $region19: #{concater_linear.1} parent=1 // pred_check_branch
      %113 = sbr.rel (0) target = $region21
    $region20: #{concater_linear.1} parent=1 // pred_region
      %114 = dma.done [#allocation3], 256
    $region21: #{concater_linear.1} parent=1 // pred_fallthru
      _
    %115 = vsyncpa [#allocation3], 1

</llo_original>
